<compile_context>
chip_gen: v6e
topology: v6e:2x2x1
jax: 0.10.0
libtpu: 0.0.40
codegen_flags: <defaults>
</compile_context>

<pallas_src>
import jax
import jax.numpy as jnp
from jax.experimental import pallas as pl
from jax.experimental.pallas import tpu as pltpu


def _round_up(x, m):
    return (x + m - 1) // m * m


def _vmem_capacity_bytes():
    """Per-TensorCore VMEM capacity; conservative (v7x) fallback."""
    try:
        return int(pltpu.get_tpu_info().vmem_capacity_bytes)
    except Exception:
        return 64 * 1024 * 1024


# ----------------------------- kernels --------------------------------------

def siamese_fused_kernel(x_ref, w1_ref, b1_ref, w2_ref, b2_ref, out_ref):
    """Single-pass kernel (w1 fully VMEM-resident, grid = batch tiles only)."""
    h = jnp.dot(x_ref[...], w1_ref[...], preferred_element_type=jnp.float32)
    h = jnp.maximum(h + b1_ref[...], 0.0)                       # f32 VPU epilogue
    out = jnp.dot(h.astype(jnp.bfloat16), w2_ref[...],
                  preferred_element_type=jnp.float32)
    out_ref[...] = (out + b2_ref[...]).astype(out_ref.dtype)


def siamese_ktiled_kernel(x_ref, w1_ref, b1_ref, w2_ref, b2_ref, out_ref,
                          acc_ref):
    """K-tiled kernel for large D: layer-1 accumulates in a f32 VMEM scratch."""
    k = pl.program_id(1)

    @pl.when(k == 0)
    def _():
        acc_ref[...] = jnp.zeros_like(acc_ref)

    acc_ref[...] += jnp.dot(x_ref[...], w1_ref[...],
                            preferred_element_type=jnp.float32)

    @pl.when(k == pl.num_programs(1) - 1)
    def _():
        h = jnp.maximum(acc_ref[...] + b1_ref[...], 0.0)
        out = jnp.dot(h.astype(jnp.bfloat16), w2_ref[...],
                      preferred_element_type=jnp.float32)
        out_ref[...] = (out + b2_ref[...]).astype(out_ref.dtype)


# ----------------------------- wrapper ---------------------------------------

def _vmem_footprint(TM, TK, HIDp, Ep):
    """Estimated VMEM bytes for one kernel instance (double-buffered specs)."""
    bf16, f32, dbuf = 2, 4, 2
    vmem = dbuf * TM * TK * bf16             # x tile
    vmem += dbuf * TK * HIDp * bf16          # w1 tile (resident when TK == Dp)
    vmem += dbuf * 8 * HIDp * f32            # b1 (sublane padded)
    vmem += dbuf * HIDp * Ep * bf16          # w2 (resident)
    vmem += dbuf * 8 * Ep * f32              # b2
    vmem += dbuf * TM * Ep * f32             # out tile
    vmem += TM * HIDp * f32                  # f32 hidden / acc scratch
    return vmem


def siamese_forward(x1, x2, params):
    """x1, x2: (B, C, H, W) float32.  Returns (emb1, emb2), each (B, E) f32."""
    w1, b1, w2, b2 = params
    B = x1.shape[0]
    D, HID = w1.shape
    E = w2.shape[1]
    rows = 2 * B

    # Lane-dense layouts: pad embedding dims up to 128-lane multiples so the
    # output store path is unmasked vst (E<128 would be ~4.5x slower stores).
    HIDp = _round_up(HID, 128)
    Ep = _round_up(E, 128)

    # Generation-matched batch tile.  256 rows fill the 256-wide v6e/v7x MXU
    # and keep >=2 batch tiles for v7x's two TensorCores when rows >= 512;
    # 128 already fills the v5e MXU; tiny batches round to 16 sublanes (bf16
    # packs 16 rows per vreg).
    if rows >= 512:
        TM = 256
    elif rows >= 128:
        TM = 128
    else:
        TM = _round_up(rows, 16)
    P = _round_up(rows, TM)

    # Reduction tile: biggest TK this generation's VMEM allows.  When w1 fits
    # fully (TK == Dp) the single-pass kernel is used and w1 is loaded exactly
    # once instead of once per batch tile.
    vmem_cap = _vmem_capacity_bytes()
    budget = int(0.70 * vmem_cap) - (2 << 20)    # headroom + internal scratch
    Dp = _round_up(D, 128)
    TK = 128
    for cand in (Dp, 4096, 2048, 1024, 512, 256, 128):
        if cand > Dp or Dp % cand != 0:
            continue
        if _vmem_footprint(TM, cand, HIDp, Ep) <= budget:
            TK = cand
            break
    resident = (TK == Dp)

    # ---- operand prep: one concat+cast pass; pad only when actually needed.
    x = jnp.concatenate([x1.reshape(B, -1), x2.reshape(B, -1)],
                        axis=0).astype(jnp.bfloat16)
    if P != rows or Dp != D:
        x = jnp.pad(x, ((0, P - rows), (0, Dp - D)))

    w1b = w1.astype(jnp.bfloat16)
    if Dp != D or HIDp != HID:
        w1b = jnp.pad(w1b, ((0, Dp - D), (0, HIDp - HID)))
    w2b = w2.astype(jnp.bfloat16)
    if HIDp != HID or Ep != E:
        w2b = jnp.pad(w2b, ((0, HIDp - HID), (0, Ep - E)))
    b1f = b1.astype(jnp.float32).reshape(1, HID)
    if HIDp != HID:
        b1f = jnp.pad(b1f, ((0, 0), (0, HIDp - HID)))
    b2f = b2.astype(jnp.float32).reshape(1, E)
    if Ep != E:
        b2f = jnp.pad(b2f, ((0, 0), (0, Ep - E)))

    nbt = P // TM
    nkt = Dp // TK

    flops = 2 * P * Dp * HIDp + 2 * P * HIDp * Ep
    w1_bytes = Dp * HIDp * 2 * (1 if resident else nbt)
    bytes_accessed = (P * Dp * 2 + w1_bytes + HIDp * Ep * 2
                      + HIDp * 4 + Ep * 4 + P * Ep * 4)

    footprint = _vmem_footprint(TM, TK, HIDp, Ep)
    vmem_limit = int(min(vmem_cap, max(32 << 20, footprint + (4 << 20))))

    if resident:
        kernel = siamese_fused_kernel
        grid = (nbt,)
        in_specs = [
            pl.BlockSpec((TM, Dp), lambda i: (i, 0)),      # x batch tile
            pl.BlockSpec((Dp, HIDp), lambda i: (0, 0)),    # w1 resident
            pl.BlockSpec((1, HIDp), lambda i: (0, 0)),     # b1 resident
            pl.BlockSpec((HIDp, Ep), lambda i: (0, 0)),    # w2 resident
            pl.BlockSpec((1, Ep), lambda i: (0, 0)),       # b2 resident
        ]
        out_specs = pl.BlockSpec((TM, Ep), lambda i: (i, 0))
        scratch_shapes = []
        dim_sem = ("parallel",)
    else:
        kernel = siamese_ktiled_kernel
        grid = (nbt, nkt)
        in_specs = [
            pl.BlockSpec((TM, TK), lambda i, k: (i, k)),    # x batch/K tile
            pl.BlockSpec((TK, HIDp), lambda i, k: (k, 0)),  # w1 K-tile
            pl.BlockSpec((1, HIDp), lambda i, k: (0, 0)),   # b1 resident
            pl.BlockSpec((HIDp, Ep), lambda i, k: (0, 0)),  # w2 resident
            pl.BlockSpec((1, Ep), lambda i, k: (0, 0)),     # b2 resident
        ]
        out_specs = pl.BlockSpec((TM, Ep), lambda i, k: (i, 0))
        scratch_shapes = [pltpu.VMEM((TM, HIDp), jnp.float32)]
        dim_sem = ("parallel", "arbitrary")

    out = pl.pallas_call(
        kernel,
        out_shape=jax.ShapeDtypeStruct((P, Ep), jnp.float32),
        grid_spec=pltpu.PrefetchScalarGridSpec(
            num_scalar_prefetch=0,
            grid=grid,
            in_specs=in_specs,
            out_specs=out_specs,
            scratch_shapes=scratch_shapes,
        ),
        compiler_params=pltpu.CompilerParams(
            dimension_semantics=dim_sem,
            vmem_limit_bytes=vmem_limit,
        ),
        cost_estimate=pl.CostEstimate(
            flops=flops, transcendentals=0, bytes_accessed=int(bytes_accessed)),
    )(x, w1b, b1f, w2b, b2f)

    # Un-stack the two shared-weight branches (drop row / lane padding).
    return out[:B, :E], out[B:rows, :E]


def init_params(key, d_in, d_hidden, d_out):
    k1, k2 = jax.random.split(key)
    w1 = (jax.random.normal(k1, (d_in, d_hidden), jnp.float32)
          * (1.0 / jnp.sqrt(d_in)))
    b1 = jnp.zeros((1, d_hidden), jnp.float32)
    w2 = (jax.random.normal(k2, (d_hidden, d_out), jnp.float32)
          * (1.0 / jnp.sqrt(d_hidden)))
    b2 = jnp.zeros((1, d_out), jnp.float32)
    return w1, b1, w2, b2


def reference_forward(x1, x2, params, op_dtype=jnp.float32):
    """Pure-JAX reference.  op_dtype=bf16 mirrors the kernel's MXU numerics."""
    w1, b1, w2, b2 = params

    def emb(x):
        xf = x.reshape(x.shape[0], -1).astype(op_dtype)
        h = jnp.dot(xf, w1.astype(op_dtype),
                    preferred_element_type=jnp.float32)
        h = jnp.maximum(h + b1, 0.0)
        o = jnp.dot(h.astype(op_dtype), w2.astype(op_dtype),
                    preferred_element_type=jnp.float32)
        return o + b2

    return emb(x1), emb(x2)


if __name__ == "__main__":
    B, C, H, W = 2, 4, 16, 16          # NCHW, matching the PyTorch module
    D = C * H * W                      # 1024
    HID, E = 256, 128                  # hidden / embedding dims (lane-dense)

    key = jax.random.PRNGKey(0)
    kx1, kx2, kp = jax.random.split(key, 3)
    x1 = jax.random.normal(kx1, (B, C, H, W), jnp.float32)
    x2 = jax.random.normal(kx2, (B, C, H, W), jnp.float32)
    params = init_params(kp, D, HID, E)

    fwd = jax.jit(siamese_forward)      # fuse wrapper-side concat/cast/pad
    out1, out2 = fwd(x1, x2, params)
    jax.block_until_ready((out1, out2))

    # Tight check against a reference using the same bf16-operand numerics.
    rb1, rb2 = reference_forward(x1, x2, params, op_dtype=jnp.bfloat16)
    assert jnp.allclose(out1, rb1, atol=1e-3, rtol=1e-3)
    assert jnp.allclose(out2, rb2, atol=1e-3, rtol=1e-3)

    # Loose check against the f32 module semantics (bf16 MXU operands).
    rf1, rf2 = reference_forward(x1, x2, params, op_dtype=jnp.float32)
    assert jnp.allclose(out1, rf1, atol=5e-2, rtol=5e-2)
    assert jnp.allclose(out2, rf2, atol=5e-2, rtol=5e-2)

    print("KERNEL_OK")
</pallas_src>

<mosaic_0001>
module attributes {stable_mosaic.version = 11 : i64} {
  func.func @siamese_fused_kernel(%arg0: i32, %arg1: memref<16x1024xbf16, #tpu.memory_space<vmem>>, %arg2: memref<1024x256xbf16, #tpu.memory_space<vmem>>, %arg3: memref<1x256xf32, #tpu.memory_space<vmem>>, %arg4: memref<256x128xbf16, #tpu.memory_space<vmem>>, %arg5: memref<1x128xf32, #tpu.memory_space<vmem>>, %arg6: memref<16x128xf32, #tpu.memory_space<vmem>>) attributes {dimension_semantics = [#tpu.dimension_semantics<parallel>], iteration_bounds = array<i64: 1>, scalar_prefetch = 0 : i64, scratch_operands = 0 : i64, tpu.core_type = #tpu.core_type<tc>, window_params = [{transform_indices = @transform_0, window_bounds = array<i64: 16, 1024>}, {pipeline_mode = #tpu.pipeline_mode<synchronous>, transform_indices = @transform_1, window_bounds = array<i64: 1024, 256>}, {pipeline_mode = #tpu.pipeline_mode<synchronous>, transform_indices = @transform_2, window_bounds = array<i64: 1, 256>}, {pipeline_mode = #tpu.pipeline_mode<synchronous>, transform_indices = @transform_3, window_bounds = array<i64: 256, 128>}, {pipeline_mode = #tpu.pipeline_mode<synchronous>, transform_indices = @transform_4, window_bounds = array<i64: 1, 128>}, {transform_indices = @transform_5, window_bounds = array<i64: 16, 128>}]} {
    %c0 = arith.constant 0 : index
    %c0_0 = arith.constant 0 : index
    %0 = vector.load %arg1[%c0, %c0_0] : memref<16x1024xbf16, #tpu.memory_space<vmem>>, vector<16x1024xbf16>
    %c0_1 = arith.constant 0 : index
    %c0_2 = arith.constant 0 : index
    %1 = vector.load %arg2[%c0_1, %c0_2] : memref<1024x256xbf16, #tpu.memory_space<vmem>>, vector<1024x256xbf16>
    %cst = arith.constant dense<0.000000e+00> : vector<16x256xf32>
    %2 = tpu.matmul %0, %1, %cst {dimension_numbers = #tpu.dot_dimension_numbers<[1], [0], [0], [1], [0, 0, 1, 1], [], []>} : vector<16x1024xbf16>, vector<1024x256xbf16>, vector<16x256xf32> -> vector<16x256xf32>
    %c0_3 = arith.constant 0 : index
    %c0_4 = arith.constant 0 : index
    %3 = vector.load %arg3[%c0_3, %c0_4] : memref<1x256xf32, #tpu.memory_space<vmem>>, vector<1x256xf32>
    %4 = vector.broadcast %3 : vector<1x256xf32> to vector<16x256xf32>
    %5 = arith.addf %2, %4 : vector<16x256xf32>
    %cst_5 = arith.constant 0.000000e+00 : f32
    %6 = vector.broadcast %cst_5 : f32 to vector<16x256xf32>
    %7 = arith.maximumf %5, %6 : vector<16x256xf32>
    %8 = arith.truncf %7 : vector<16x256xf32> to vector<16x256xbf16>
    %c0_6 = arith.constant 0 : index
    %c0_7 = arith.constant 0 : index
    %9 = vector.load %arg4[%c0_6, %c0_7] : memref<256x128xbf16, #tpu.memory_space<vmem>>, vector<256x128xbf16>
    %cst_8 = arith.constant dense<0.000000e+00> : vector<16x128xf32>
    %10 = tpu.matmul %8, %9, %cst_8 {dimension_numbers = #tpu.dot_dimension_numbers<[1], [0], [0], [1], [0, 0, 1, 1], [], []>} : vector<16x256xbf16>, vector<256x128xbf16>, vector<16x128xf32> -> vector<16x128xf32>
    %c0_9 = arith.constant 0 : index
    %c0_10 = arith.constant 0 : index
    %11 = vector.load %arg5[%c0_9, %c0_10] : memref<1x128xf32, #tpu.memory_space<vmem>>, vector<1x128xf32>
    %12 = vector.broadcast %11 : vector<1x128xf32> to vector<16x128xf32>
    %13 = arith.addf %10, %12 : vector<16x128xf32>
    %c0_11 = arith.constant 0 : index
    %c0_12 = arith.constant 0 : index
    %14 = vector.load %arg6[%c0_11, %c0_12] : memref<16x128xf32, #tpu.memory_space<vmem>>, vector<16x128xf32>
    tpu.vector_store %arg6[%c0_11, %c0_12], %13 {strides = array<i32>} : memref<16x128xf32, #tpu.memory_space<vmem>>, vector<16x128xf32>,
    return
  }
  func.func @transform_0(%arg0: i32) -> (i32, i32) {
    %c0_i32 = arith.constant 0 : i32
    %c0_i32_0 = arith.constant 0 : i32
    return %arg0, %c0_i32 : i32, i32
  }
  func.func @transform_1(%arg0: i32) -> (i32, i32) {
    %c0_i32 = arith.constant 0 : i32
    %c0_i32_0 = arith.constant 0 : i32
    %c0_i32_1 = arith.constant 0 : i32
    return %c0_i32, %c0_i32_0 : i32, i32
  }
  func.func @transform_2(%arg0: i32) -> (i32, i32) {
    %c0_i32 = arith.constant 0 : i32
    %c0_i32_0 = arith.constant 0 : i32
    %c0_i32_1 = arith.constant 0 : i32
    return %c0_i32, %c0_i32_0 : i32, i32
  }
  func.func @transform_3(%arg0: i32) -> (i32, i32) {
    %c0_i32 = arith.constant 0 : i32
    %c0_i32_0 = arith.constant 0 : i32
    %c0_i32_1 = arith.constant 0 : i32
    return %c0_i32, %c0_i32_0 : i32, i32
  }
  func.func @transform_4(%arg0: i32) -> (i32, i32) {
    %c0_i32 = arith.constant 0 : i32
    %c0_i32_0 = arith.constant 0 : i32
    %c0_i32_1 = arith.constant 0 : i32
    return %c0_i32, %c0_i32_0 : i32, i32
  }
  func.func @transform_5(%arg0: i32) -> (i32, i32) {
    %c0_i32 = arith.constant 0 : i32
    %c0_i32_0 = arith.constant 0 : i32
    return %arg0, %c0_i32 : i32, i32
  }
}

</mosaic_0001>

<llo_original>
// kernel: siamese_forward.1
$region0: #{siamese_forward.1}
  #allocation0 [shape = 'u32[]', space=smem, size = 0x4, offset = 0x4, fixed_abs, tag = 'smem constant byte address 0x4 - core index']
  #allocation1 [shape = 'u32[144,128]{1,0:T(1,128)}', space=vmem, size = 0x12000, scoped, tag = 'internal scratch']
  %s0 = inlined_call_operand.vmem [shape: bf16[16,1024], index: 0, kind: input, shape index: {}]
  %s1 = inlined_call_operand.vmem [shape: bf16[1024,256], index: 1, kind: input, shape index: {}]
  %s2 = inlined_call_operand.vmem [shape: f32[1,256], index: 2, kind: input, shape index: {}]
  %s3 = inlined_call_operand.vmem [shape: bf16[256,128], index: 3, kind: input, shape index: {}]
  %s4 = inlined_call_operand.vmem [shape: f32[1,128], index: 4, kind: input, shape index: {}]
  %s5 = inlined_call_operand.vmem [shape: f32[16,128], index: 5, kind: output, shape index: {}]
  %s6 = sld [smem:[#allocation0]]
  $region30: #{siamese_forward.1} parent=0
    _
  %s8 = ssub.s32 1, %s6
  %s9 = scalar_select 0, %s8, %s6
  // Predicated region
  $region2: #{siamese_forward.1} parent=0 // pred_check
    _
  $region3: #{siamese_forward.1} parent=0 // pred_check_branch
    %11 = sbr.rel (0) target = $region5
  $region4: #{siamese_forward.1} parent=0 // pred_region
    _
  $region5: #{siamese_forward.1} parent=0 // pred_fallthru
    _
  // Predicated region
  $region6: #{siamese_forward.1} parent=0 // pred_check
    _
  $region7: #{siamese_forward.1} parent=0 // pred_check_branch
    %13 = sbr.rel (0) target = $region9
  $region8: #{siamese_forward.1} parent=0 // pred_region
    _
  $region9: #{siamese_forward.1} parent=0 // pred_fallthru
    _
  // Predicated region
  $region10: #{siamese_forward.1} parent=0 // pred_check
    _
  $region11: #{siamese_forward.1} parent=0 // pred_check_branch
    %15 = sbr.rel (0) target = $region13
  $region12: #{siamese_forward.1} parent=0 // pred_region
    _
  $region13: #{siamese_forward.1} parent=0 // pred_fallthru
    _
  // Predicated region
  $region14: #{siamese_forward.1} parent=0 // pred_check
    _
  $region15: #{siamese_forward.1} parent=0 // pred_check_branch
    %17 = sbr.rel (0) target = $region17
  $region16: #{siamese_forward.1} parent=0 // pred_region
    _
  $region17: #{siamese_forward.1} parent=0 // pred_fallthru
    _
  // Predicated region
  $region18: #{siamese_forward.1} parent=0 // pred_check
    _
  $region19: #{siamese_forward.1} parent=0 // pred_check_branch
    %19 = sbr.rel (0) target = $region21
  $region20: #{siamese_forward.1} parent=0 // pred_region
    _
  $region21: #{siamese_forward.1} parent=0 // pred_fallthru
    _
  %v21 = vld [vmem:[%s0] sm:$0xff]
  %v22 = vld [vmem:[%s0 + $0x8] sm:$0xff]
  %v23 = vld [vmem:[%s0 + $0x10] sm:$0xff]
  %v24 = vld [vmem:[%s0 + $0x18] sm:$0xff]
  %v25 = vld [vmem:[%s0 + $0x20] sm:$0xff]
  %v26 = vld [vmem:[%s0 + $0x28] sm:$0xff]
  %v27 = vld [vmem:[%s0 + $0x30] sm:$0xff]
  %v28 = vld [vmem:[%s0 + $0x38] sm:$0xff]
  %v29 = vld [vmem:[%s1] sm:$0xff]
  %v30 = vld [vmem:[%s1 + $0x8] sm:$0xff]
  %v31 = vld [vmem:[%s1 + $0x10] sm:$0xff]
  %v32 = vld [vmem:[%s1 + $0x18] sm:$0xff]
  %v33 = vld [vmem:[%s1 + $0x20] sm:$0xff]
  %v34 = vld [vmem:[%s1 + $0x28] sm:$0xff]
  %v35 = vld [vmem:[%s1 + $0x30] sm:$0xff]
  %v36 = vld [vmem:[%s1 + $0x38] sm:$0xff]
  %v37 = vld [vmem:[%s1 + $0x40] sm:$0xff]
  %v38 = vld [vmem:[%s1 + $0x48] sm:$0xff]
  %v39 = vld [vmem:[%s1 + $0x50] sm:$0xff]
  %v40 = vld [vmem:[%s1 + $0x58] sm:$0xff]
  %v41 = vld [vmem:[%s1 + $0x60] sm:$0xff]
  %v42 = vld [vmem:[%s1 + $0x68] sm:$0xff]
  %v43 = vld [vmem:[%s1 + $0x70] sm:$0xff]
  %v44 = vld [vmem:[%s1 + $0x78] sm:$0xff]
  %v45 = vld [vmem:[%s1 + $0x80] sm:$0xff]
  %v46 = vld [vmem:[%s1 + $0x88] sm:$0xff]
  %v47 = vld [vmem:[%s1 + $0x90] sm:$0xff]
  %v48 = vld [vmem:[%s1 + $0x98] sm:$0xff]
  %v49 = vld [vmem:[%s1 + $0xa0] sm:$0xff]
  %v50 = vld [vmem:[%s1 + $0xa8] sm:$0xff]
  %v51 = vld [vmem:[%s1 + $0xb0] sm:$0xff]
  %v52 = vld [vmem:[%s1 + $0xb8] sm:$0xff]
  %v53 = vld [vmem:[%s1 + $0xc0] sm:$0xff]
  %v54 = vld [vmem:[%s1 + $0xc8] sm:$0xff]
  %v55 = vld [vmem:[%s1 + $0xd0] sm:$0xff]
  %v56 = vld [vmem:[%s1 + $0xd8] sm:$0xff]
  %v57 = vld [vmem:[%s1 + $0xe0] sm:$0xff]
  %v58 = vld [vmem:[%s1 + $0xe8] sm:$0xff]
  %v59 = vld [vmem:[%s1 + $0xf0] sm:$0xff]
  %v60 = vld [vmem:[%s1 + $0xf8] sm:$0xff]
  %v61 = vld [vmem:[%s1 + $0x100] sm:$0xff]
  %v62 = vld [vmem:[%s1 + $0x108] sm:$0xff]
  %v63 = vld [vmem:[%s1 + $0x110] sm:$0xff]
  %v64 = vld [vmem:[%s1 + $0x118] sm:$0xff]
  %v65 = vld [vmem:[%s1 + $0x120] sm:$0xff]
  %v66 = vld [vmem:[%s1 + $0x128] sm:$0xff]
  %v67 = vld [vmem:[%s1 + $0x130] sm:$0xff]
  %v68 = vld [vmem:[%s1 + $0x138] sm:$0xff]
  %v69 = vld [vmem:[%s1 + $0x140] sm:$0xff]
  %v70 = vld [vmem:[%s1 + $0x148] sm:$0xff]
  %v71 = vld [vmem:[%s1 + $0x150] sm:$0xff]
  %v72 = vld [vmem:[%s1 + $0x158] sm:$0xff]
  %v73 = vld [vmem:[%s1 + $0x160] sm:$0xff]
  %v74 = vld [vmem:[%s1 + $0x168] sm:$0xff]
  %v75 = vld [vmem:[%s1 + $0x170] sm:$0xff]
  %v76 = vld [vmem:[%s1 + $0x178] sm:$0xff]
  %v77 = vld [vmem:[%s1 + $0x180] sm:$0xff]
  %v78 = vld [vmem:[%s1 + $0x188] sm:$0xff]
  %v79 = vld [vmem:[%s1 + $0x190] sm:$0xff]
  %v80 = vld [vmem:[%s1 + $0x198] sm:$0xff]
  %v81 = vld [vmem:[%s1 + $0x1a0] sm:$0xff]
  %v82 = vld [vmem:[%s1 + $0x1a8] sm:$0xff]
  %v83 = vld [vmem:[%s1 + $0x1b0] sm:$0xff]
  %v84 = vld [vmem:[%s1 + $0x1b8] sm:$0xff]
  %v85 = vld [vmem:[%s1 + $0x1c0] sm:$0xff]
  %v86 = vld [vmem:[%s1 + $0x1c8] sm:$0xff]
  %v87 = vld [vmem:[%s1 + $0x1d0] sm:$0xff]
  %v88 = vld [vmem:[%s1 + $0x1d8] sm:$0xff]
  %v89 = vld [vmem:[%s1 + $0x1e0] sm:$0xff]
  %v90 = vld [vmem:[%s1 + $0x1e8] sm:$0xff]
  %v91 = vld [vmem:[%s1 + $0x1f0] sm:$0xff]
  %v92 = vld [vmem:[%s1 + $0x1f8] sm:$0xff]
  %v93 = vld [vmem:[%s1 + $0x200] sm:$0xff]
  %v94 = vld [vmem:[%s1 + $0x208] sm:$0xff]
  %v95 = vld [vmem:[%s1 + $0x210] sm:$0xff]
  %v96 = vld [vmem:[%s1 + $0x218] sm:$0xff]
  %v97 = vld [vmem:[%s1 + $0x220] sm:$0xff]
  %v98 = vld [vmem:[%s1 + $0x228] sm:$0xff]
  %v99 = vld [vmem:[%s1 + $0x230] sm:$0xff]
  %v100 = vld [vmem:[%s1 + $0x238] sm:$0xff]
  %v101 = vld [vmem:[%s1 + $0x240] sm:$0xff]
  %v102 = vld [vmem:[%s1 + $0x248] sm:$0xff]
  %v103 = vld [vmem:[%s1 + $0x250] sm:$0xff]
  %v104 = vld [vmem:[%s1 + $0x258] sm:$0xff]
  %v105 = vld [vmem:[%s1 + $0x260] sm:$0xff]
  %v106 = vld [vmem:[%s1 + $0x268] sm:$0xff]
  %v107 = vld [vmem:[%s1 + $0x270] sm:$0xff]
  %v108 = vld [vmem:[%s1 + $0x278] sm:$0xff]
  %v109 = vld [vmem:[%s1 + $0x280] sm:$0xff]
  %v110 = vld [vmem:[%s1 + $0x288] sm:$0xff]
  %v111 = vld [vmem:[%s1 + $0x290] sm:$0xff]
  %v112 = vld [vmem:[%s1 + $0x298] sm:$0xff]
  %v113 = vld [vmem:[%s1 + $0x2a0] sm:$0xff]
  %v114 = vld [vmem:[%s1 + $0x2a8] sm:$0xff]
  %v115 = vld [vmem:[%s1 + $0x2b0] sm:$0xff]
  %v116 = vld [vmem:[%s1 + $0x2b8] sm:$0xff]
  %v117 = vld [vmem:[%s1 + $0x2c0] sm:$0xff]
  %v118 = vld [vmem:[%s1 + $0x2c8] sm:$0xff]
  %v119 = vld [vmem:[%s1 + $0x2d0] sm:$0xff]
  %v120 = vld [vmem:[%s1 + $0x2d8] sm:$0xff]
  %v121 = vld [vmem:[%s1 + $0x2e0] sm:$0xff]
  %v122 = vld [vmem:[%s1 + $0x2e8] sm:$0xff]
  %v123 = vld [vmem:[%s1 + $0x2f0] sm:$0xff]
  %v124 = vld [vmem:[%s1 + $0x2f8] sm:$0xff]
  %v125 = vld [vmem:[%s1 + $0x300] sm:$0xff]
  %v126 = vld [vmem:[%s1 + $0x308] sm:$0xff]
  %v127 = vld [vmem:[%s1 + $0x310] sm:$0xff]
  %v128 = vld [vmem:[%s1 + $0x318] sm:$0xff]
  %v129 = vld [vmem:[%s1 + $0x320] sm:$0xff]
  %v130 = vld [vmem:[%s1 + $0x328] sm:$0xff]
  %v131 = vld [vmem:[%s1 + $0x330] sm:$0xff]
  %v132 = vld [vmem:[%s1 + $0x338] sm:$0xff]
  %v133 = vld [vmem:[%s1 + $0x340] sm:$0xff]
  %v134 = vld [vmem:[%s1 + $0x348] sm:$0xff]
  %v135 = vld [vmem:[%s1 + $0x350] sm:$0xff]
  %v136 = vld [vmem:[%s1 + $0x358] sm:$0xff]
  %v137 = vld [vmem:[%s1 + $0x360] sm:$0xff]
  %v138 = vld [vmem:[%s1 + $0x368] sm:$0xff]
  %v139 = vld [vmem:[%s1 + $0x370] sm:$0xff]
  %v140 = vld [vmem:[%s1 + $0x378] sm:$0xff]
  %v141 = vld [vmem:[%s1 + $0x380] sm:$0xff]
  %v142 = vld [vmem:[%s1 + $0x388] sm:$0xff]
  %v143 = vld [vmem:[%s1 + $0x390] sm:$0xff]
  %v144 = vld [vmem:[%s1 + $0x398] sm:$0xff]
  %v145 = vld [vmem:[%s1 + $0x3a0] sm:$0xff]
  %v146 = vld [vmem:[%s1 + $0x3a8] sm:$0xff]
  %v147 = vld [vmem:[%s1 + $0x3b0] sm:$0xff]
  %v148 = vld [vmem:[%s1 + $0x3b8] sm:$0xff]
  %v149 = vld [vmem:[%s1 + $0x3c0] sm:$0xff]
  %v150 = vld [vmem:[%s1 + $0x3c8] sm:$0xff]
  %v151 = vld [vmem:[%s1 + $0x3d0] sm:$0xff]
  %v152 = vld [vmem:[%s1 + $0x3d8] sm:$0xff]
  %v153 = vld [vmem:[%s1 + $0x3e0] sm:$0xff]
  %v154 = vld [vmem:[%s1 + $0x3e8] sm:$0xff]
  %v155 = vld [vmem:[%s1 + $0x3f0] sm:$0xff]
  %v156 = vld [vmem:[%s1 + $0x3f8] sm:$0xff]
  %v157 = vld [vmem:[%s2] sm:$0x3]
  %v159 = vlaneseq
  %v160 = vshrl.u32 %v159, 7
  %v161 = vsub.s32 0, %v160
  %v162 = vrot.slane %v157, %v161
  %v163 = vlaneseq
  %v164 = vshrl.u32 %v163, 7
  %v165 = vsub.s32 1, %v164
  %v166 = vrot.slane %v157, %v165
  %v177 = vunpack.c.l.b16 %v21
  %v178 = vunpack.c.h.b16 %v21
  %v179 = vunpack.c.l.b16 %v22
  %v180 = vunpack.c.h.b16 %v22
  %v181 = vunpack.c.l.b16 %v23
  %v182 = vunpack.c.h.b16 %v23
  %v183 = vunpack.c.l.b16 %v24
  %v184 = vunpack.c.h.b16 %v24
  %v185 = vunpack.c.l.b16 %v25
  %v186 = vunpack.c.h.b16 %v25
  %v187 = vunpack.c.l.b16 %v26
  %v188 = vunpack.c.h.b16 %v26
  %v189 = vunpack.c.l.b16 %v27
  %v190 = vunpack.c.h.b16 %v27
  %v191 = vunpack.c.l.b16 %v28
  %v192 = vunpack.c.h.b16 %v28
  %v193 = vpack.c.b16 %v185, %v177
  %v194 = vpack.c.b16 %v186, %v178
  %v195 = vpack.c.b16 %v187, %v179
  %v196 = vpack.c.b16 %v188, %v180
  %v197 = vpack.c.b16 %v189, %v181
  %v198 = vpack.c.b16 %v190, %v182
  %v199 = vpack.c.b16 %v191, %v183
  %v200 = vpack.c.b16 %v192, %v184
  %v337 = vunpack.c.l.b16 %v29
  %v338 = vunpack.c.h.b16 %v29
  %v339 = vunpack.c.l.b16 %v30
  %v340 = vunpack.c.h.b16 %v30
  %v341 = vunpack.c.l.b16 %v31
  %v342 = vunpack.c.h.b16 %v31
  %v343 = vunpack.c.l.b16 %v32
  %v344 = vunpack.c.h.b16 %v32
  %v345 = vunpack.c.l.b16 %v33
  %v346 = vunpack.c.h.b16 %v33
  %v347 = vunpack.c.l.b16 %v34
  %v348 = vunpack.c.h.b16 %v34
  %v349 = vunpack.c.l.b16 %v35
  %v350 = vunpack.c.h.b16 %v35
  %v351 = vunpack.c.l.b16 %v36
  %v352 = vunpack.c.h.b16 %v36
  %v353 = vunpack.c.l.b16 %v37
  %v354 = vunpack.c.h.b16 %v37
  %v355 = vunpack.c.l.b16 %v38
  %v356 = vunpack.c.h.b16 %v38
  %v357 = vunpack.c.l.b16 %v39
  %v358 = vunpack.c.h.b16 %v39
  %v359 = vunpack.c.l.b16 %v40
  %v360 = vunpack.c.h.b16 %v40
  %v361 = vunpack.c.l.b16 %v41
  %v362 = vunpack.c.h.b16 %v41
  %v363 = vunpack.c.l.b16 %v42
  %v364 = vunpack.c.h.b16 %v42
  %v365 = vunpack.c.l.b16 %v43
  %v366 = vunpack.c.h.b16 %v43
  %v367 = vunpack.c.l.b16 %v44
  %v368 = vunpack.c.h.b16 %v44
  %v369 = vunpack.c.l.b16 %v45
  %v370 = vunpack.c.h.b16 %v45
  %v371 = vunpack.c.l.b16 %v46
  %v372 = vunpack.c.h.b16 %v46
  %v373 = vunpack.c.l.b16 %v47
  %v374 = vunpack.c.h.b16 %v47
  %v375 = vunpack.c.l.b16 %v48
  %v376 = vunpack.c.h.b16 %v48
  %v377 = vunpack.c.l.b16 %v49
  %v378 = vunpack.c.h.b16 %v49
  %v379 = vunpack.c.l.b16 %v50
  %v380 = vunpack.c.h.b16 %v50
  %v381 = vunpack.c.l.b16 %v51
  %v382 = vunpack.c.h.b16 %v51
  %v383 = vunpack.c.l.b16 %v52
  %v384 = vunpack.c.h.b16 %v52
  %v385 = vunpack.c.l.b16 %v53
  %v386 = vunpack.c.h.b16 %v53
  %v387 = vunpack.c.l.b16 %v54
  %v388 = vunpack.c.h.b16 %v54
  %v389 = vunpack.c.l.b16 %v55
  %v390 = vunpack.c.h.b16 %v55
  %v391 = vunpack.c.l.b16 %v56
  %v392 = vunpack.c.h.b16 %v56
  %v393 = vunpack.c.l.b16 %v57
  %v394 = vunpack.c.h.b16 %v57
  %v395 = vunpack.c.l.b16 %v58
  %v396 = vunpack.c.h.b16 %v58
  %v397 = vunpack.c.l.b16 %v59
  %v398 = vunpack.c.h.b16 %v59
  %v399 = vunpack.c.l.b16 %v60
  %v400 = vunpack.c.h.b16 %v60
  %v401 = vunpack.c.l.b16 %v61
  %v402 = vunpack.c.h.b16 %v61
  %v403 = vunpack.c.l.b16 %v62
  %v404 = vunpack.c.h.b16 %v62
  %v405 = vunpack.c.l.b16 %v63
  %v406 = vunpack.c.h.b16 %v63
  %v407 = vunpack.c.l.b16 %v64
  %v408 = vunpack.c.h.b16 %v64
  %v409 = vunpack.c.l.b16 %v65
  %v410 = vunpack.c.h.b16 %v65
  %v411 = vunpack.c.l.b16 %v66
  %v412 = vunpack.c.h.b16 %v66
  %v413 = vunpack.c.l.b16 %v67
  %v414 = vunpack.c.h.b16 %v67
  %v415 = vunpack.c.l.b16 %v68
  %v416 = vunpack.c.h.b16 %v68
  %v417 = vunpack.c.l.b16 %v69
  %v418 = vunpack.c.h.b16 %v69
  %v419 = vunpack.c.l.b16 %v70
  %v420 = vunpack.c.h.b16 %v70
  %v421 = vunpack.c.l.b16 %v71
  %v422 = vunpack.c.h.b16 %v71
  %v423 = vunpack.c.l.b16 %v72
  %v424 = vunpack.c.h.b16 %v72
  %v425 = vunpack.c.l.b16 %v73
  %v426 = vunpack.c.h.b16 %v73
  %v427 = vunpack.c.l.b16 %v74
  %v428 = vunpack.c.h.b16 %v74
  %v429 = vunpack.c.l.b16 %v75
  %v430 = vunpack.c.h.b16 %v75
  %v431 = vunpack.c.l.b16 %v76
  %v432 = vunpack.c.h.b16 %v76
  %v433 = vunpack.c.l.b16 %v77
  %v434 = vunpack.c.h.b16 %v77
  %v435 = vunpack.c.l.b16 %v78
  %v436 = vunpack.c.h.b16 %v78
  %v437 = vunpack.c.l.b16 %v79
  %v438 = vunpack.c.h.b16 %v79
  %v439 = vunpack.c.l.b16 %v80
  %v440 = vunpack.c.h.b16 %v80
  %v441 = vunpack.c.l.b16 %v81
  %v442 = vunpack.c.h.b16 %v81
  %v443 = vunpack.c.l.b16 %v82
  %v444 = vunpack.c.h.b16 %v82
  %v445 = vunpack.c.l.b16 %v83
  %v446 = vunpack.c.h.b16 %v83
  %v447 = vunpack.c.l.b16 %v84
  %v448 = vunpack.c.h.b16 %v84
  %v449 = vunpack.c.l.b16 %v85
  %v450 = vunpack.c.h.b16 %v85
  %v451 = vunpack.c.l.b16 %v86
  %v452 = vunpack.c.h.b16 %v86
  %v453 = vunpack.c.l.b16 %v87
  %v454 = vunpack.c.h.b16 %v87
  %v455 = vunpack.c.l.b16 %v88
  %v456 = vunpack.c.h.b16 %v88
  %v457 = vunpack.c.l.b16 %v89
  %v458 = vunpack.c.h.b16 %v89
  %v459 = vunpack.c.l.b16 %v90
  %v460 = vunpack.c.h.b16 %v90
  %v461 = vunpack.c.l.b16 %v91
  %v462 = vunpack.c.h.b16 %v91
  %v463 = vunpack.c.l.b16 %v92
  %v464 = vunpack.c.h.b16 %v92
  %v465 = vunpack.c.l.b16 %v93
  %v466 = vunpack.c.h.b16 %v93
  %v467 = vunpack.c.l.b16 %v94
  %v468 = vunpack.c.h.b16 %v94
  %v469 = vunpack.c.l.b16 %v95
  %v470 = vunpack.c.h.b16 %v95
  %v471 = vunpack.c.l.b16 %v96
  %v472 = vunpack.c.h.b16 %v96
  %v473 = vunpack.c.l.b16 %v97
  %v474 = vunpack.c.h.b16 %v97
  %v475 = vunpack.c.l.b16 %v98
  %v476 = vunpack.c.h.b16 %v98
  %v477 = vunpack.c.l.b16 %v99
  %v478 = vunpack.c.h.b16 %v99
  %v479 = vunpack.c.l.b16 %v100
  %v480 = vunpack.c.h.b16 %v100
  %v481 = vunpack.c.l.b16 %v101
  %v482 = vunpack.c.h.b16 %v101
  %v483 = vunpack.c.l.b16 %v102
  %v484 = vunpack.c.h.b16 %v102
  %v485 = vunpack.c.l.b16 %v103
  %v486 = vunpack.c.h.b16 %v103
  %v487 = vunpack.c.l.b16 %v104
  %v488 = vunpack.c.h.b16 %v104
  %v489 = vunpack.c.l.b16 %v105
  %v490 = vunpack.c.h.b16 %v105
  %v491 = vunpack.c.l.b16 %v106
  %v492 = vunpack.c.h.b16 %v106
  %v493 = vunpack.c.l.b16 %v107
  %v494 = vunpack.c.h.b16 %v107
  %v495 = vunpack.c.l.b16 %v108
  %v496 = vunpack.c.h.b16 %v108
  %v497 = vunpack.c.l.b16 %v109
  %v498 = vunpack.c.h.b16 %v109
  %v499 = vunpack.c.l.b16 %v110
  %v500 = vunpack.c.h.b16 %v110
  %v501 = vunpack.c.l.b16 %v111
  %v502 = vunpack.c.h.b16 %v111
  %v503 = vunpack.c.l.b16 %v112
  %v504 = vunpack.c.h.b16 %v112
  %v505 = vunpack.c.l.b16 %v113
  %v506 = vunpack.c.h.b16 %v113
  %v507 = vunpack.c.l.b16 %v114
  %v508 = vunpack.c.h.b16 %v114
  %v509 = vunpack.c.l.b16 %v115
  %v510 = vunpack.c.h.b16 %v115
  %v511 = vunpack.c.l.b16 %v116
  %v512 = vunpack.c.h.b16 %v116
  %v513 = vunpack.c.l.b16 %v117
  %v514 = vunpack.c.h.b16 %v117
  %v515 = vunpack.c.l.b16 %v118
  %v516 = vunpack.c.h.b16 %v118
  %v517 = vunpack.c.l.b16 %v119
  %v518 = vunpack.c.h.b16 %v119
  %v519 = vunpack.c.l.b16 %v120
  %v520 = vunpack.c.h.b16 %v120
  %v521 = vunpack.c.l.b16 %v121
  %v522 = vunpack.c.h.b16 %v121
  %v523 = vunpack.c.l.b16 %v122
  %v524 = vunpack.c.h.b16 %v122
  %v525 = vunpack.c.l.b16 %v123
  %v526 = vunpack.c.h.b16 %v123
  %v527 = vunpack.c.l.b16 %v124
  %v528 = vunpack.c.h.b16 %v124
  %v529 = vunpack.c.l.b16 %v125
  %v530 = vunpack.c.h.b16 %v125
  %v531 = vunpack.c.l.b16 %v126
  %v532 = vunpack.c.h.b16 %v126
  %v533 = vunpack.c.l.b16 %v127
  %v534 = vunpack.c.h.b16 %v127
  %v535 = vunpack.c.l.b16 %v128
  %v536 = vunpack.c.h.b16 %v128
  %v537 = vunpack.c.l.b16 %v129
  %v538 = vunpack.c.h.b16 %v129
  %v539 = vunpack.c.l.b16 %v130
  %v540 = vunpack.c.h.b16 %v130
  %v541 = vunpack.c.l.b16 %v131
  %v542 = vunpack.c.h.b16 %v131
  %v543 = vunpack.c.l.b16 %v132
  %v544 = vunpack.c.h.b16 %v132
  %v545 = vunpack.c.l.b16 %v133
  %v546 = vunpack.c.h.b16 %v133
  %v547 = vunpack.c.l.b16 %v134
  %v548 = vunpack.c.h.b16 %v134
  %v549 = vunpack.c.l.b16 %v135
  %v550 = vunpack.c.h.b16 %v135
  %v551 = vunpack.c.l.b16 %v136
  %v552 = vunpack.c.h.b16 %v136
  %v553 = vunpack.c.l.b16 %v137
  %v554 = vunpack.c.h.b16 %v137
  %v555 = vunpack.c.l.b16 %v138
  %v556 = vunpack.c.h.b16 %v138
  %v557 = vunpack.c.l.b16 %v139
  %v558 = vunpack.c.h.b16 %v139
  %v559 = vunpack.c.l.b16 %v140
  %v560 = vunpack.c.h.b16 %v140
  %v561 = vunpack.c.l.b16 %v141
  %v562 = vunpack.c.h.b16 %v141
  %v563 = vunpack.c.l.b16 %v142
  %v564 = vunpack.c.h.b16 %v142
  %v565 = vunpack.c.l.b16 %v143
  %v566 = vunpack.c.h.b16 %v143
  %v567 = vunpack.c.l.b16 %v144
  %v568 = vunpack.c.h.b16 %v144
  %v569 = vunpack.c.l.b16 %v145
  %v570 = vunpack.c.h.b16 %v145
  %v571 = vunpack.c.l.b16 %v146
  %v572 = vunpack.c.h.b16 %v146
  %v573 = vunpack.c.l.b16 %v147
  %v574 = vunpack.c.h.b16 %v147
  %v575 = vunpack.c.l.b16 %v148
  %v576 = vunpack.c.h.b16 %v148
  %v577 = vunpack.c.l.b16 %v149
  %v578 = vunpack.c.h.b16 %v149
  %v579 = vunpack.c.l.b16 %v150
  %v580 = vunpack.c.h.b16 %v150
  %v581 = vunpack.c.l.b16 %v151
  %v582 = vunpack.c.h.b16 %v151
  %v583 = vunpack.c.l.b16 %v152
  %v584 = vunpack.c.h.b16 %v152
  %v585 = vunpack.c.l.b16 %v153
  %v586 = vunpack.c.h.b16 %v153
  %v587 = vunpack.c.l.b16 %v154
  %v588 = vunpack.c.h.b16 %v154
  %v589 = vunpack.c.l.b16 %v155
  %v590 = vunpack.c.h.b16 %v155
  %v591 = vunpack.c.l.b16 %v156
  %v592 = vunpack.c.h.b16 %v156
  %v593 = vpack.c.b16 %v339, %v337
  %v594 = vpack.c.b16 %v340, %v338
  %v595 = vpack.c.b16 %v343, %v341
  %v596 = vpack.c.b16 %v344, %v342
  %v597 = vpack.c.b16 %v347, %v345
  %v598 = vpack.c.b16 %v348, %v346
  %v599 = vpack.c.b16 %v351, %v349
  %v600 = vpack.c.b16 %v352, %v350
  %v601 = vpack.c.b16 %v355, %v353
  %v602 = vpack.c.b16 %v356, %v354
  %v603 = vpack.c.b16 %v359, %v357
  %v604 = vpack.c.b16 %v360, %v358
  %v605 = vpack.c.b16 %v363, %v361
  %v606 = vpack.c.b16 %v364, %v362
  %v607 = vpack.c.b16 %v367, %v365
  %v608 = vpack.c.b16 %v368, %v366
  %v609 = vpack.c.b16 %v371, %v369
  %v610 = vpack.c.b16 %v372, %v370
  %v611 = vpack.c.b16 %v375, %v373
  %v612 = vpack.c.b16 %v376, %v374
  %v613 = vpack.c.b16 %v379, %v377
  %v614 = vpack.c.b16 %v380, %v378
  %v615 = vpack.c.b16 %v383, %v381
  %v616 = vpack.c.b16 %v384, %v382
  %v617 = vpack.c.b16 %v387, %v385
  %v618 = vpack.c.b16 %v388, %v386
  %v619 = vpack.c.b16 %v391, %v389
  %v620 = vpack.c.b16 %v392, %v390
  %v621 = vpack.c.b16 %v395, %v393
  %v622 = vpack.c.b16 %v396, %v394
  %v623 = vpack.c.b16 %v399, %v397
  %v624 = vpack.c.b16 %v400, %v398
  %v625 = vpack.c.b16 %v403, %v401
  %v626 = vpack.c.b16 %v404, %v402
  %v627 = vpack.c.b16 %v407, %v405
  %v628 = vpack.c.b16 %v408, %v406
  %v629 = vpack.c.b16 %v411, %v409
  %v630 = vpack.c.b16 %v412, %v410
  %v631 = vpack.c.b16 %v415, %v413
  %v632 = vpack.c.b16 %v416, %v414
  %v633 = vpack.c.b16 %v419, %v417
  %v634 = vpack.c.b16 %v420, %v418
  %v635 = vpack.c.b16 %v423, %v421
  %v636 = vpack.c.b16 %v424, %v422
  %v637 = vpack.c.b16 %v427, %v425
  %v638 = vpack.c.b16 %v428, %v426
  %v639 = vpack.c.b16 %v431, %v429
  %v640 = vpack.c.b16 %v432, %v430
  %v641 = vpack.c.b16 %v435, %v433
  %v642 = vpack.c.b16 %v436, %v434
  %v643 = vpack.c.b16 %v439, %v437
  %v644 = vpack.c.b16 %v440, %v438
  %v645 = vpack.c.b16 %v443, %v441
  %v646 = vpack.c.b16 %v444, %v442
  %v647 = vpack.c.b16 %v447, %v445
  %v648 = vpack.c.b16 %v448, %v446
  %v649 = vpack.c.b16 %v451, %v449
  %v650 = vpack.c.b16 %v452, %v450
  %v651 = vpack.c.b16 %v455, %v453
  %v652 = vpack.c.b16 %v456, %v454
  %v653 = vpack.c.b16 %v459, %v457
  %v654 = vpack.c.b16 %v460, %v458
  %v655 = vpack.c.b16 %v463, %v461
  %v656 = vpack.c.b16 %v464, %v462
  %v657 = vpack.c.b16 %v467, %v465
  %v658 = vpack.c.b16 %v468, %v466
  %v659 = vpack.c.b16 %v471, %v469
  %v660 = vpack.c.b16 %v472, %v470
  %v661 = vpack.c.b16 %v475, %v473
  %v662 = vpack.c.b16 %v476, %v474
  %v663 = vpack.c.b16 %v479, %v477
  %v664 = vpack.c.b16 %v480, %v478
  %v665 = vpack.c.b16 %v483, %v481
  %v666 = vpack.c.b16 %v484, %v482
  %v667 = vpack.c.b16 %v487, %v485
  %v668 = vpack.c.b16 %v488, %v486
  %v669 = vpack.c.b16 %v491, %v489
  %v670 = vpack.c.b16 %v492, %v490
  %v671 = vpack.c.b16 %v495, %v493
  %v672 = vpack.c.b16 %v496, %v494
  %v673 = vpack.c.b16 %v499, %v497
  %v674 = vpack.c.b16 %v500, %v498
  %v675 = vpack.c.b16 %v503, %v501
  %v676 = vpack.c.b16 %v504, %v502
  %v677 = vpack.c.b16 %v507, %v505
  %v678 = vpack.c.b16 %v508, %v506
  %v679 = vpack.c.b16 %v511, %v509
  %v680 = vpack.c.b16 %v512, %v510
  %v681 = vpack.c.b16 %v515, %v513
  %v682 = vpack.c.b16 %v516, %v514
  %v683 = vpack.c.b16 %v519, %v517
  %v684 = vpack.c.b16 %v520, %v518
  %v685 = vpack.c.b16 %v523, %v521
  %v686 = vpack.c.b16 %v524, %v522
  %v687 = vpack.c.b16 %v527, %v525
  %v688 = vpack.c.b16 %v528, %v526
  %v689 = vpack.c.b16 %v531, %v529
  %v690 = vpack.c.b16 %v532, %v530
  %v691 = vpack.c.b16 %v535, %v533
  %v692 = vpack.c.b16 %v536, %v534
  %v693 = vpack.c.b16 %v539, %v537
  %v694 = vpack.c.b16 %v540, %v538
  %v695 = vpack.c.b16 %v543, %v541
  %v696 = vpack.c.b16 %v544, %v542
  %v697 = vpack.c.b16 %v547, %v545
  %v698 = vpack.c.b16 %v548, %v546
  %v699 = vpack.c.b16 %v551, %v549
  %v700 = vpack.c.b16 %v552, %v550
  %v701 = vpack.c.b16 %v555, %v553
  %v702 = vpack.c.b16 %v556, %v554
  %v703 = vpack.c.b16 %v559, %v557
  %v704 = vpack.c.b16 %v560, %v558
  %v705 = vpack.c.b16 %v563, %v561
  %v706 = vpack.c.b16 %v564, %v562
  %v707 = vpack.c.b16 %v567, %v565
  %v708 = vpack.c.b16 %v568, %v566
  %v709 = vpack.c.b16 %v571, %v569
  %v710 = vpack.c.b16 %v572, %v570
  %v711 = vpack.c.b16 %v575, %v573
  %v712 = vpack.c.b16 %v576, %v574
  %v713 = vpack.c.b16 %v579, %v577
  %v714 = vpack.c.b16 %v580, %v578
  %v715 = vpack.c.b16 %v583, %v581
  %v716 = vpack.c.b16 %v584, %v582
  %v717 = vpack.c.b16 %v587, %v585
  %v718 = vpack.c.b16 %v588, %v586
  %v719 = vpack.c.b16 %v591, %v589
  %v720 = vpack.c.b16 %v592, %v590
  %849 = vmatprep.subr.bf16.mxu0 %v608
  %850 = vmatpush1.bf16.msra.mxu0 %v607
  %851 = vmatprep.subr.bf16.mxu0 %v606
  %852 = vmatpush1.bf16.msra.mxu0 %v605
  %853 = vmatprep.subr.bf16.mxu0 %v604
  %854 = vmatpush1.bf16.msra.mxu0 %v603
  %855 = vmatprep.subr.bf16.mxu0 %v602
  %856 = vmatpush1.bf16.msra.mxu0 %v601
  %857 = vmatprep.subr.bf16.mxu0 %v600
  %858 = vmatpush1.bf16.msra.mxu0 %v599
  %859 = vmatprep.subr.bf16.mxu0 %v598
  %860 = vmatpush1.bf16.msra.mxu0 %v597
  %861 = vmatprep.subr.bf16.mxu0 %v596
  %862 = vmatpush1.bf16.msra.mxu0 %v595
  %863 = vmatprep.subr.bf16.mxu0 %v594
  %864 = vmatpush1.bf16.msra.mxu0 %v593
  %865 = vmatprep.subr.bf16.mxu0 %v624
  %866 = vmatpush2.bf16.msra.mxu0 %v623
  %867 = vmatprep.subr.bf16.mxu0 %v622
  %868 = vmatpush2.bf16.msra.mxu0 %v621
  %869 = vmatprep.subr.bf16.mxu0 %v620
  %870 = vmatpush2.bf16.msra.mxu0 %v619
  %871 = vmatprep.subr.bf16.mxu0 %v618
  %872 = vmatpush2.bf16.msra.mxu0 %v617
  %873 = vmatprep.subr.bf16.mxu0 %v616
  %874 = vmatpush2.bf16.msra.mxu0 %v615
  %875 = vmatprep.subr.bf16.mxu0 %v614
  %876 = vmatpush2.bf16.msra.mxu0 %v613
  %877 = vmatprep.subr.bf16.mxu0 %v612
  %878 = vmatpush2.bf16.msra.mxu0 %v611
  %879 = vmatprep.subr.bf16.mxu0 %v610
  %880 = vmatpush2.bf16.msra.mxu0 %v609
  %881 = vmatprep.mubr.bf16.mxu0 %v194
  %882 = vmatmul.mubr.bf16.gmra.mxu0 %v193
  %v883 = vpop.f32.mrf.mxu0
  %v884 = vadd.f32 %v162, %v883
  %v885 = vpop.f32.mrf.mxu0
  %v886 = vadd.f32 %v166, %v885
  %v887 = vpop.f32.mrf.mxu0
  %v888 = vadd.f32 %v162, %v887
  %v889 = vpop.f32.mrf.mxu0
  %v890 = vadd.f32 %v166, %v889
  %891 = vdwg.mxu0
  %892 = vmatprep.subr.bf16.mxu0 %v640
  %893 = vmatpush1.bf16.msra.mxu0 %v639
  %894 = vmatprep.subr.bf16.mxu0 %v638
  %895 = vmatpush1.bf16.msra.mxu0 %v637
  %896 = vmatprep.subr.bf16.mxu0 %v636
  %897 = vmatpush1.bf16.msra.mxu0 %v635
  %898 = vmatprep.subr.bf16.mxu0 %v634
  %899 = vmatpush1.bf16.msra.mxu0 %v633
  %900 = vmatprep.subr.bf16.mxu0 %v632
  %901 = vmatpush1.bf16.msra.mxu0 %v631
  %902 = vmatprep.subr.bf16.mxu0 %v630
  %903 = vmatpush1.bf16.msra.mxu0 %v629
  %904 = vmatprep.subr.bf16.mxu0 %v628
  %905 = vmatpush1.bf16.msra.mxu0 %v627
  %906 = vmatprep.subr.bf16.mxu0 %v626
  %907 = vmatpush1.bf16.msra.mxu0 %v625
  %908 = vmatprep.subr.bf16.mxu0 %v656
  %909 = vmatpush2.bf16.msra.mxu0 %v655
  %910 = vmatprep.subr.bf16.mxu0 %v654
  %911 = vmatpush2.bf16.msra.mxu0 %v653
  %912 = vmatprep.subr.bf16.mxu0 %v652
  %913 = vmatpush2.bf16.msra.mxu0 %v651
  %914 = vmatprep.subr.bf16.mxu0 %v650
  %915 = vmatpush2.bf16.msra.mxu0 %v649
  %916 = vmatprep.subr.bf16.mxu0 %v648
  %917 = vmatpush2.bf16.msra.mxu0 %v647
  %918 = vmatprep.subr.bf16.mxu0 %v646
  %919 = vmatpush2.bf16.msra.mxu0 %v645
  %920 = vmatprep.subr.bf16.mxu0 %v644
  %921 = vmatpush2.bf16.msra.mxu0 %v643
  %922 = vmatprep.subr.bf16.mxu0 %v642
  %923 = vmatpush2.bf16.msra.mxu0 %v641
  %924 = vmatprep.mubr.bf16.mxu0 %v196
  %925 = vmatmul.mubr.bf16.gmra.mxu0 %v195
  %v926 = vpop.f32.mrf.mxu0
  %v927 = vadd.f32 %v884, %v926
  %v928 = vpop.f32.mrf.mxu0
  %v929 = vadd.f32 %v886, %v928
  %v930 = vpop.f32.mrf.mxu0
  %v931 = vadd.f32 %v888, %v930
  %v932 = vpop.f32.mrf.mxu0
  %v933 = vadd.f32 %v890, %v932
  %934 = vdwg.mxu0
  %935 = vmatprep.subr.bf16.mxu0 %v672
  %936 = vmatpush1.bf16.msra.mxu0 %v671
  %937 = vmatprep.subr.bf16.mxu0 %v670
  %938 = vmatpush1.bf16.msra.mxu0 %v669
  %939 = vmatprep.subr.bf16.mxu0 %v668
  %940 = vmatpush1.bf16.msra.mxu0 %v667
  %941 = vmatprep.subr.bf16.mxu0 %v666
  %942 = vmatpush1.bf16.msra.mxu0 %v665
  %943 = vmatprep.subr.bf16.mxu0 %v664
  %944 = vmatpush1.bf16.msra.mxu0 %v663
  %945 = vmatprep.subr.bf16.mxu0 %v662
  %946 = vmatpush1.bf16.msra.mxu0 %v661
  %947 = vmatprep.subr.bf16.mxu0 %v660
  %948 = vmatpush1.bf16.msra.mxu0 %v659
  %949 = vmatprep.subr.bf16.mxu0 %v658
  %950 = vmatpush1.bf16.msra.mxu0 %v657
  %951 = vmatprep.subr.bf16.mxu0 %v688
  %952 = vmatpush2.bf16.msra.mxu0 %v687
  %953 = vmatprep.subr.bf16.mxu0 %v686
  %954 = vmatpush2.bf16.msra.mxu0 %v685
  %955 = vmatprep.subr.bf16.mxu0 %v684
  %956 = vmatpush2.bf16.msra.mxu0 %v683
  %957 = vmatprep.subr.bf16.mxu0 %v682
  %958 = vmatpush2.bf16.msra.mxu0 %v681
  %959 = vmatprep.subr.bf16.mxu0 %v680
  %960 = vmatpush2.bf16.msra.mxu0 %v679
  %961 = vmatprep.subr.bf16.mxu0 %v678
  %962 = vmatpush2.bf16.msra.mxu0 %v677
  %963 = vmatprep.subr.bf16.mxu0 %v676
  %964 = vmatpush2.bf16.msra.mxu0 %v675
  %965 = vmatprep.subr.bf16.mxu0 %v674
  %966 = vmatpush2.bf16.msra.mxu0 %v673
  %967 = vmatprep.mubr.bf16.mxu0 %v198
  %968 = vmatmul.mubr.bf16.gmra.mxu0 %v197
  %v969 = vpop.f32.mrf.mxu0
  %v970 = vadd.f32 %v927, %v969
  %v971 = vpop.f32.mrf.mxu0
  %v972 = vadd.f32 %v929, %v971
  %v973 = vpop.f32.mrf.mxu0
  %v974 = vadd.f32 %v931, %v973
  %v975 = vpop.f32.mrf.mxu0
  %v976 = vadd.f32 %v933, %v975
  %977 = vdwg.mxu0
  %978 = vmatprep.subr.bf16.mxu0 %v704
  %979 = vmatpush1.bf16.msra.mxu0 %v703
  %980 = vmatprep.subr.bf16.mxu0 %v702
  %981 = vmatpush1.bf16.msra.mxu0 %v701
  %982 = vmatprep.subr.bf16.mxu0 %v700
  %983 = vmatpush1.bf16.msra.mxu0 %v699
  %984 = vmatprep.subr.bf16.mxu0 %v698
  %985 = vmatpush1.bf16.msra.mxu0 %v697
  %986 = vmatprep.subr.bf16.mxu0 %v696
  %987 = vmatpush1.bf16.msra.mxu0 %v695
  %988 = vmatprep.subr.bf16.mxu0 %v694
  %989 = vmatpush1.bf16.msra.mxu0 %v693
  %990 = vmatprep.subr.bf16.mxu0 %v692
  %991 = vmatpush1.bf16.msra.mxu0 %v691
  %992 = vmatprep.subr.bf16.mxu0 %v690
  %993 = vmatpush1.bf16.msra.mxu0 %v689
  %994 = vmatprep.subr.bf16.mxu0 %v720
  %995 = vmatpush2.bf16.msra.mxu0 %v719
  %996 = vmatprep.subr.bf16.mxu0 %v718
  %997 = vmatpush2.bf16.msra.mxu0 %v717
  %998 = vmatprep.subr.bf16.mxu0 %v716
  %999 = vmatpush2.bf16.msra.mxu0 %v715
  %1000 = vmatprep.subr.bf16.mxu0 %v714
  %1001 = vmatpush2.bf16.msra.mxu0 %v713
  %1002 = vmatprep.subr.bf16.mxu0 %v712
  %1003 = vmatpush2.bf16.msra.mxu0 %v711
  %1004 = vmatprep.subr.bf16.mxu0 %v710
  %1005 = vmatpush2.bf16.msra.mxu0 %v709
  %1006 = vmatprep.subr.bf16.mxu0 %v708
  %1007 = vmatpush2.bf16.msra.mxu0 %v707
  %1008 = vmatprep.subr.bf16.mxu0 %v706
  %1009 = vmatpush2.bf16.msra.mxu0 %v705
  %1010 = vmatprep.mubr.bf16.mxu0 %v200
  %1011 = vmatmul.mubr.bf16.gmra.mxu0 %v199
  %v1012 = vpop.f32.mrf.mxu0
  %v1013 = vadd.f32 %v970, %v1012
  %v1014 = vpop.f32.mrf.mxu0
  %v1015 = vadd.f32 %v972, %v1014
  %v1016 = vpop.f32.mrf.mxu0
  %v1017 = vadd.f32 %v974, %v1016
  %v1018 = vpop.f32.mrf.mxu0
  %v1019 = vadd.f32 %v976, %v1018
  %1020 = vdwg.mxu0
  %v1021 = vmax.f32 %v1013, 0.0
  %v1022 = vmax.f32 %v1015, 0.0
  %v1023 = vmax.f32 %v1017, 0.0
  %v1024 = vmax.f32 %v1019, 0.0
  %v1025 = vpack.c.bf16 %v1023, %v1021
  %v1026 = vpack.c.bf16 %v1024, %v1022
  %v1027 = vld [vmem:[%s3] sm:$0xf]
  %v1028 = vld [vmem:[%s3 + $0x4] sm:$0xf]
  %v1029 = vld [vmem:[%s3 + $0x8] sm:$0xf]
  %v1030 = vld [vmem:[%s3 + $0xc] sm:$0xf]
  %v1031 = vld [vmem:[%s3 + $0x10] sm:$0xf]
  %v1032 = vld [vmem:[%s3 + $0x14] sm:$0xf]
  %v1033 = vld [vmem:[%s3 + $0x18] sm:$0xf]
  %v1034 = vld [vmem:[%s3 + $0x1c] sm:$0xf]
  %v1035 = vld [vmem:[%s3 + $0x20] sm:$0xf]
  %v1036 = vld [vmem:[%s3 + $0x24] sm:$0xf]
  %v1037 = vld [vmem:[%s3 + $0x28] sm:$0xf]
  %v1038 = vld [vmem:[%s3 + $0x2c] sm:$0xf]
  %v1039 = vld [vmem:[%s3 + $0x30] sm:$0xf]
  %v1040 = vld [vmem:[%s3 + $0x34] sm:$0xf]
  %v1041 = vld [vmem:[%s3 + $0x38] sm:$0xf]
  %v1042 = vld [vmem:[%s3 + $0x3c] sm:$0xf]
  %v1043 = vld [vmem:[%s3 + $0x40] sm:$0xf]
  %v1044 = vld [vmem:[%s3 + $0x44] sm:$0xf]
  %v1045 = vld [vmem:[%s3 + $0x48] sm:$0xf]
  %v1046 = vld [vmem:[%s3 + $0x4c] sm:$0xf]
  %v1047 = vld [vmem:[%s3 + $0x50] sm:$0xf]
  %v1048 = vld [vmem:[%s3 + $0x54] sm:$0xf]
  %v1049 = vld [vmem:[%s3 + $0x58] sm:$0xf]
  %v1050 = vld [vmem:[%s3 + $0x5c] sm:$0xf]
  %v1051 = vld [vmem:[%s3 + $0x60] sm:$0xf]
  %v1052 = vld [vmem:[%s3 + $0x64] sm:$0xf]
  %v1053 = vld [vmem:[%s3 + $0x68] sm:$0xf]
  %v1054 = vld [vmem:[%s3 + $0x6c] sm:$0xf]
  %v1055 = vld [vmem:[%s3 + $0x70] sm:$0xf]
  %v1056 = vld [vmem:[%s3 + $0x74] sm:$0xf]
  %v1057 = vld [vmem:[%s3 + $0x78] sm:$0xf]
  %v1058 = vld [vmem:[%s3 + $0x7c] sm:$0xf]
  %v1059 = vld [vmem:[%s4] sm:$0x1]
  %v1061 = vlaneseq
  %v1062 = vshrl.u32 %v1061, 7
  %v1063 = vsub.s32 0, %v1062
  %v1064 = vrot.slane %v1059, %v1063
  %v1098 = vunpack.c.l.b16 %v1027
  %v1099 = vunpack.c.l.b16 %v1028
  %v1100 = vunpack.c.l.b16 %v1029
  %v1101 = vunpack.c.l.b16 %v1030
  %v1102 = vunpack.c.l.b16 %v1031
  %v1103 = vunpack.c.l.b16 %v1032
  %v1104 = vunpack.c.l.b16 %v1033
  %v1105 = vunpack.c.l.b16 %v1034
  %v1106 = vunpack.c.l.b16 %v1035
  %v1107 = vunpack.c.l.b16 %v1036
  %v1108 = vunpack.c.l.b16 %v1037
  %v1109 = vunpack.c.l.b16 %v1038
  %v1110 = vunpack.c.l.b16 %v1039
  %v1111 = vunpack.c.l.b16 %v1040
  %v1112 = vunpack.c.l.b16 %v1041
  %v1113 = vunpack.c.l.b16 %v1042
  %v1114 = vunpack.c.l.b16 %v1043
  %v1115 = vunpack.c.l.b16 %v1044
  %v1116 = vunpack.c.l.b16 %v1045
  %v1117 = vunpack.c.l.b16 %v1046
  %v1118 = vunpack.c.l.b16 %v1047
  %v1119 = vunpack.c.l.b16 %v1048
  %v1120 = vunpack.c.l.b16 %v1049
  %v1121 = vunpack.c.l.b16 %v1050
  %v1122 = vunpack.c.l.b16 %v1051
  %v1123 = vunpack.c.l.b16 %v1052
  %v1124 = vunpack.c.l.b16 %v1053
  %v1125 = vunpack.c.l.b16 %v1054
  %v1126 = vunpack.c.l.b16 %v1055
  %v1127 = vunpack.c.l.b16 %v1056
  %v1128 = vunpack.c.l.b16 %v1057
  %v1129 = vunpack.c.l.b16 %v1058
  %v1130 = vpack.c.b16 %v1099, %v1098
  %v1131 = vpack.c.b16 %v1101, %v1100
  %v1132 = vpack.c.b16 %v1103, %v1102
  %v1133 = vpack.c.b16 %v1105, %v1104
  %v1134 = vpack.c.b16 %v1107, %v1106
  %v1135 = vpack.c.b16 %v1109, %v1108
  %v1136 = vpack.c.b16 %v1111, %v1110
  %v1137 = vpack.c.b16 %v1113, %v1112
  %v1138 = vpack.c.b16 %v1115, %v1114
  %v1139 = vpack.c.b16 %v1117, %v1116
  %v1140 = vpack.c.b16 %v1119, %v1118
  %v1141 = vpack.c.b16 %v1121, %v1120
  %v1142 = vpack.c.b16 %v1123, %v1122
  %v1143 = vpack.c.b16 %v1125, %v1124
  %v1144 = vpack.c.b16 %v1127, %v1126
  %v1145 = vpack.c.b16 %v1129, %v1128
  %1162 = vmatprep.subr.bf16.mxu0 0
  %1163 = vmatpush1.bf16.msra.mxu0 %v1137
  %1164 = vmatprep.subr.bf16.mxu0 0
  %1165 = vmatpush1.bf16.msra.mxu0 %v1136
  %1166 = vmatprep.subr.bf16.mxu0 0
  %1167 = vmatpush1.bf16.msra.mxu0 %v1135
  %1168 = vmatprep.subr.bf16.mxu0 0
  %1169 = vmatpush1.bf16.msra.mxu0 %v1134
  %1170 = vmatprep.subr.bf16.mxu0 0
  %1171 = vmatpush1.bf16.msra.mxu0 %v1133
  %1172 = vmatprep.subr.bf16.mxu0 0
  %1173 = vmatpush1.bf16.msra.mxu0 %v1132
  %1174 = vmatprep.subr.bf16.mxu0 0
  %1175 = vmatpush1.bf16.msra.mxu0 %v1131
  %1176 = vmatprep.subr.bf16.mxu0 0
  %1177 = vmatpush1.bf16.msra.mxu0 %v1130
  %1178 = vmatprep.subr.bf16.mxu0 0
  %1179 = vmatpush2.bf16.msra.mxu0 %v1145
  %1180 = vmatprep.subr.bf16.mxu0 0
  %1181 = vmatpush2.bf16.msra.mxu0 %v1144
  %1182 = vmatprep.subr.bf16.mxu0 0
  %1183 = vmatpush2.bf16.msra.mxu0 %v1143
  %1184 = vmatprep.subr.bf16.mxu0 0
  %1185 = vmatpush2.bf16.msra.mxu0 %v1142
  %1186 = vmatprep.subr.bf16.mxu0 0
  %1187 = vmatpush2.bf16.msra.mxu0 %v1141
  %1188 = vmatprep.subr.bf16.mxu0 0
  %1189 = vmatpush2.bf16.msra.mxu0 %v1140
  %1190 = vmatprep.subr.bf16.mxu0 0
  %1191 = vmatpush2.bf16.msra.mxu0 %v1139
  %1192 = vmatprep.subr.bf16.mxu0 0
  %1193 = vmatpush2.bf16.msra.mxu0 %v1138
  %1194 = vmatprep.mubr.bf16.mxu0 %v1026
  %1195 = vmatmul.mubr.bf16.gmra.mxu0 %v1025
  %v1196 = vpop.f32.mrf.mxu0
  %v1197 = vadd.f32 %v1064, %v1196
  %v1198 = vpop.f32.mrf.mxu0
  %v1199 = vpop.f32.mrf.mxu0
  %v1200 = vadd.f32 %v1064, %v1199
  %v1201 = vpop.f32.mrf.mxu0
  %1202 = vdwg.mxu0
  %1203 = vst [vmem:[%s5] sm:$0xff] %v1197
  %1204 = vst [vmem:[%s5 + $0x8] sm:$0xff] %v1200
  // Predicated region
  $region22: #{siamese_forward.1} parent=0 // pred_check
    _
  $region23: #{siamese_forward.1} parent=0 // pred_check_branch
    %1206 = sbr.rel (0) target = $region25
  $region24: #{siamese_forward.1} parent=0 // pred_region
    _
  $region25: #{siamese_forward.1} parent=0 // pred_fallthru
    _
  // Predicated region
  $region26: #{siamese_forward.1} parent=0 // pred_check
    _
  $region27: #{siamese_forward.1} parent=0 // pred_check_branch
    %1208 = sbr.rel (0) target = $region29
  $region28: #{siamese_forward.1} parent=0 // pred_region
    _
  $region29: #{siamese_forward.1} parent=0 // pred_fallthru
    _

</llo_original>
